<compile_context>
chip_gen: v5e
topology: v5e:2x2
jax: 0.10.0
libtpu: 0.0.40
codegen_flags: <defaults>
</compile_context>

<pallas_src>
import jax
import jax.numpy as jnp
from jax.experimental import pallas as pl
from jax.experimental.pallas import tpu as pltpu


_LANE = 128
_SUBLANE = 8
_MAX_TILE_B = 8192
_VMEM_TILE_BUDGET = 16 * 1024 * 1024  # per-step activation+output VMEM budget (safe on all gens)


def _round_up(x, m):
    return ((x + m - 1) // m) * m


# ----------------------------- Pallas kernel --------------------------------
def _qpred_kernel(ge_ref, fp_ref, sh_ref, tp_ref,              # activations (TILE_B, d_i)  bf16/f32
                  w1_ge_ref, w1_fp_ref, w1_sh_ref, w1_tp_ref,  # W1^T slabs  (d_i, hidden)  bf16
                  w2_ref,                                      # W2 row      (1, hidden)    f32
                  b2_ref,                                      # bias        (1, 1)         f32 (SMEM)
                  o_ref):                                      # out         (TILE_B, 1)    f32
    def slab(x_ref, w_ref):
        # bf16 x bf16 on the MXU, f32 accumulation. astype is a no-op for bf16 inputs.
        return jnp.dot(x_ref[...].astype(jnp.bfloat16), w_ref[...],
                       preferred_element_type=jnp.float32)

    # First layer with the concat fused via row-slabbed W1^T.
    h = slab(ge_ref, w1_ge_ref)
    h = h + slab(fp_ref, w1_fp_ref)
    h = h + slab(sh_ref, w1_sh_ref)
    h = h + slab(tp_ref, w1_tp_ref)
    h = jnp.maximum(h, 0.0)                                    # ReLU, f32 on VPU

    # Second layer (out_dim == 1): VPU multiply + XLU lane reduce instead of an
    # N=1 MXU pass; bias folded in from the SMEM scalar.
    q = jnp.sum(h * w2_ref[...], axis=-1, keepdims=True) + b2_ref[0, 0]
    o_ref[...] = q


# ------------------------------- tiling --------------------------------------
def _choose_tile_b(batch, act_dtypes):
    """Pick the batch tile from a VMEM budget (128-lane padding, double buffers)."""
    per_row = 0
    for dt in act_dtypes:
        per_row += _LANE * jnp.dtype(dt).itemsize * 2          # each input, lane-padded, 2 buffers
    per_row += _LANE * 4 * 2                                   # f32 output block, lane-padded, 2 buffers

    max_tile = (_VMEM_TILE_BUDGET // per_row) // _SUBLANE * _SUBLANE
    max_tile = max(_SUBLANE, min(_MAX_TILE_B, max_tile))

    b8 = _round_up(batch, _SUBLANE)
    if b8 <= 512:
        tile_b = min(b8, max_tile)                             # tiny batch: one step
    else:
        # keep >= 2 grid steps so v7x's two TensorCores both stream tiles.
        tile_b = min(max_tile, _round_up(pl.cdiv(b8, 2), _SUBLANE))
    return tile_b, per_row


# ------------------------------- wrapper --------------------------------------
def gnn_qfunction_forward(params, graph_emb, ac_first_prob, ac_second_hot,
                          ac_third_prob):
    """Returns qpred of shape (B, 1), f32.

    Activations are consumed in whatever dtype the caller provides (bf16
    preferred: it halves HBM reads; the kernel casts to bf16 for the MXU
    anyway). No padding / dtype copies are made in HBM: the last grid block
    may be partial (rows are independent, OOB rows are masked on store).
    """
    B = graph_emb.shape[0]
    acts = (graph_emb, ac_first_prob, ac_second_hot, ac_third_prob)
    tile_b, per_row = _choose_tile_b(B, [a.dtype for a in acts])
    grid = (pl.cdiv(B, tile_b),)

    w1_ge, w1_fp = params["w1_ge"], params["w1_fp"]
    w1_sh, w1_tp = params["w1_sh"], params["w1_tp"]
    w2_row, b2 = params["w2_row"], params["b2"]
    hidden = w2_row.shape[1]

    # Explicit VMEM limit: tile buffers + small resident weights + headroom.
    weight_bytes = sum(int(w.size) * w.dtype.itemsize * 2 for w in
                       (w1_ge, w1_fp, w1_sh, w1_tp, w2_row))
    vmem_limit = int(max(16 << 20, min(48 << 20,
                                       tile_b * per_row + weight_bytes + (8 << 20))))

    def x_spec(feat):
        return pl.BlockSpec((tile_b, feat), lambda i: (i, 0))

    def w_spec(rows):
        # Same block every grid step -> weights stay resident in VMEM.
        return pl.BlockSpec((rows, hidden), lambda i: (0, 0))

    out = pl.pallas_call(
        _qpred_kernel,
        out_shape=jax.ShapeDtypeStruct((B, 1), jnp.float32),
        grid=grid,
        in_specs=[
            x_spec(graph_emb.shape[1]), x_spec(ac_first_prob.shape[1]),
            x_spec(ac_second_hot.shape[1]), x_spec(ac_third_prob.shape[1]),
            w_spec(w1_ge.shape[0]), w_spec(w1_fp.shape[0]),
            w_spec(w1_sh.shape[0]), w_spec(w1_tp.shape[0]),
            pl.BlockSpec((1, hidden), lambda i: (0, 0)),                                  # W2 row (VMEM)
            pl.BlockSpec((1, 1), lambda i: (0, 0), memory_space=pltpu.MemorySpace.SMEM),  # bias scalar
        ],
        # TODO(synk): lane-dense (num_tiles, tile_b) output layout would replace the
        # width-1 masked stores; output is <1% of traffic here so it is not worth it.
        out_specs=pl.BlockSpec((tile_b, 1), lambda i: (i, 0)),
        compiler_params=pltpu.CompilerParams(
            dimension_semantics=("parallel",),
            vmem_limit_bytes=vmem_limit),
    )(graph_emb, ac_first_prob, ac_second_hot, ac_third_prob,
      w1_ge, w1_fp, w1_sh, w1_tp, w2_row, b2)

    return out


def init_params(key, seg_dims, hidden, out_dim=1):
    """seg_dims = (d_graph_emb, d_first, d_second, d_third). W1 stored as bf16
    row-slabs of W1^T (in_features x hidden); W2 stored as an f32 (1, hidden) row.

    NOTE: first-layer operands are bf16 (MXU) with f32 accumulation; this is a
    deliberate ~1e-2-relative deviation from the f32 nn.Linear in PyTorch.
    """
    d = sum(seg_dims)
    k1, k2, k3 = jax.random.split(key, 3)
    # PyTorch shapes: W1 (hidden, d), W2 (out_dim, hidden), b2 (out_dim,)
    w1 = jax.random.normal(k1, (hidden, d), jnp.float32) * (1.0 / jnp.sqrt(d))
    w2 = jax.random.normal(k2, (out_dim, hidden), jnp.float32) * (1.0 / jnp.sqrt(hidden))
    b2 = jax.random.normal(k3, (out_dim,), jnp.float32) * 0.01

    w1_t = w1.T  # (d, hidden)
    s0, s1, s2, _ = seg_dims
    o1, o2, o3 = s0, s0 + s1, s0 + s1 + s2
    return {
        "w1_ge": w1_t[:o1].astype(jnp.bfloat16),        # (s0, hidden)
        "w1_fp": w1_t[o1:o2].astype(jnp.bfloat16),      # (s1, hidden)
        "w1_sh": w1_t[o2:o3].astype(jnp.bfloat16),      # (s2, hidden)
        "w1_tp": w1_t[o3:].astype(jnp.bfloat16),        # (s3, hidden)
        "w2_row": w2.reshape(1, hidden).astype(jnp.float32),
        "b2": b2.reshape(1, out_dim).astype(jnp.float32),
    }


# -------------------------------- main ----------------------------------------
if __name__ == "__main__":
    # Small synthetic sizes consistent with the module:
    #   emb_size = 32  -> graph_emb has 2*emb_size = 64 features
    #   len(FRAG_VOCAB) = 16 (ac_second_hot width)
    #   the "+80" in d = 2*emb_size + len(FRAG_VOCAB) + 80 splits as
    #   ac_first_prob: 40 features, ac_third_prob: 40 features
    batch = 8
    emb_size = 32
    frag_vocab = 16
    first_dim, third_dim = 40, 40
    seg_dims = (2 * emb_size, first_dim, frag_vocab, third_dim)
    d = sum(seg_dims)                 # 160
    hidden = d // 2                   # 80

    key = jax.random.PRNGKey(0)
    kp, k1, k2, k3, k4 = jax.random.split(key, 5)

    params = init_params(kp, seg_dims, hidden, out_dim=1)

    # Activations produced natively in bf16 (halves kernel HBM reads; the kernel
    # would cast to bf16 for the MXU regardless). f32 inputs also work unchanged.
    graph_emb = jax.random.normal(k1, (batch, 2 * emb_size), jnp.bfloat16)
    ac_first_prob = jax.nn.softmax(
        jax.random.normal(k2, (batch, first_dim), jnp.bfloat16), axis=-1)
    ac_second_hot = jax.nn.one_hot(
        jax.random.randint(k3, (batch,), 0, frag_vocab), frag_vocab, dtype=jnp.bfloat16)
    ac_third_prob = jax.nn.softmax(
        jax.random.normal(k4, (batch, third_dim), jnp.bfloat16), axis=-1)

    qpred = gnn_qfunction_forward(params, graph_emb, ac_first_prob,
                                  ac_second_hot, ac_third_prob)
    qpred = jax.block_until_ready(qpred)
    assert qpred.shape == (batch, 1)

    # Reference in plain JAX with the same numerics (bf16 MXU operands, f32 accum).
    x = jnp.concatenate([graph_emb, ac_first_prob, ac_second_hot, ac_third_prob], axis=-1)
    w1_t_bf = jnp.concatenate(
        [params["w1_ge"], params["w1_fp"], params["w1_sh"], params["w1_tp"]], axis=0)
    h_ref = jnp.maximum(
        jnp.dot(x.astype(jnp.bfloat16), w1_t_bf, preferred_element_type=jnp.float32), 0.0)
    ref = jnp.sum(h_ref * params["w2_row"], axis=-1, keepdims=True) + params["b2"][0, 0]
    assert jnp.allclose(qpred, ref, atol=2e-4, rtol=2e-4), (
        float(jnp.max(jnp.abs(qpred - ref))))

    print("KERNEL_OK")
</pallas_src>

<mosaic_0001>
module attributes {stable_mosaic.version = 11 : i64} {
  func.func @_qpred_kernel(%arg0: i32, %arg1: memref<8x64xbf16, #tpu.memory_space<vmem>>, %arg2: memref<8x40xbf16, #tpu.memory_space<vmem>>, %arg3: memref<8x16xbf16, #tpu.memory_space<vmem>>, %arg4: memref<8x40xbf16, #tpu.memory_space<vmem>>, %arg5: memref<64x80xbf16, #tpu.memory_space<vmem>>, %arg6: memref<40x80xbf16, #tpu.memory_space<vmem>>, %arg7: memref<16x80xbf16, #tpu.memory_space<vmem>>, %arg8: memref<40x80xbf16, #tpu.memory_space<vmem>>, %arg9: memref<1x80xf32, #tpu.memory_space<vmem>>, %arg10: memref<1x1xf32, #tpu.memory_space<smem>>, %arg11: memref<8x1xf32, #tpu.memory_space<vmem>>) attributes {dimension_semantics = [#tpu.dimension_semantics<parallel>], iteration_bounds = array<i64: 1>, scalar_prefetch = 0 : i64, scratch_operands = 0 : i64, tpu.core_type = #tpu.core_type<tc>, window_params = [{transform_indices = @transform_0, window_bounds = array<i64: 8, 64>}, {transform_indices = @transform_1, window_bounds = array<i64: 8, 40>}, {transform_indices = @transform_2, window_bounds = array<i64: 8, 16>}, {transform_indices = @transform_3, window_bounds = array<i64: 8, 40>}, {pipeline_mode = #tpu.pipeline_mode<synchronous>, transform_indices = @transform_4, window_bounds = array<i64: 64, 80>}, {pipeline_mode = #tpu.pipeline_mode<synchronous>, transform_indices = @transform_5, window_bounds = array<i64: 40, 80>}, {pipeline_mode = #tpu.pipeline_mode<synchronous>, transform_indices = @transform_6, window_bounds = array<i64: 16, 80>}, {pipeline_mode = #tpu.pipeline_mode<synchronous>, transform_indices = @transform_7, window_bounds = array<i64: 40, 80>}, {pipeline_mode = #tpu.pipeline_mode<synchronous>, transform_indices = @transform_8, window_bounds = array<i64: 1, 80>}, {transform_indices = @transform_9, window_bounds = array<i64: 1, 1>}, {transform_indices = @transform_10, window_bounds = array<i64: 8, 1>}]} {
    %c0 = arith.constant 0 : index
    %c0_0 = arith.constant 0 : index
    %0 = vector.load %arg1[%c0, %c0_0] : memref<8x64xbf16, #tpu.memory_space<vmem>>, vector<8x64xbf16>
    %c0_1 = arith.constant 0 : index
    %c0_2 = arith.constant 0 : index
    %1 = vector.load %arg5[%c0_1, %c0_2] : memref<64x80xbf16, #tpu.memory_space<vmem>>, vector<64x80xbf16>
    %cst = arith.constant dense<0.000000e+00> : vector<8x80xf32>
    %2 = tpu.matmul %0, %1, %cst {dimension_numbers = #tpu.dot_dimension_numbers<[1], [0], [0], [1], [0, 0, 1, 1], [], []>} : vector<8x64xbf16>, vector<64x80xbf16>, vector<8x80xf32> -> vector<8x80xf32>
    %c0_3 = arith.constant 0 : index
    %c0_4 = arith.constant 0 : index
    %3 = vector.load %arg2[%c0_3, %c0_4] : memref<8x40xbf16, #tpu.memory_space<vmem>>, vector<8x40xbf16>
    %c0_5 = arith.constant 0 : index
    %c0_6 = arith.constant 0 : index
    %4 = vector.load %arg6[%c0_5, %c0_6] : memref<40x80xbf16, #tpu.memory_space<vmem>>, vector<40x80xbf16>
    %cst_7 = arith.constant dense<0.000000e+00> : vector<8x80xf32>
    %5 = tpu.matmul %3, %4, %cst_7 {dimension_numbers = #tpu.dot_dimension_numbers<[1], [0], [0], [1], [0, 0, 1, 1], [], []>} : vector<8x40xbf16>, vector<40x80xbf16>, vector<8x80xf32> -> vector<8x80xf32>
    %6 = arith.addf %2, %5 : vector<8x80xf32>
    %c0_8 = arith.constant 0 : index
    %c0_9 = arith.constant 0 : index
    %7 = vector.load %arg3[%c0_8, %c0_9] : memref<8x16xbf16, #tpu.memory_space<vmem>>, vector<8x16xbf16>
    %c0_10 = arith.constant 0 : index
    %c0_11 = arith.constant 0 : index
    %8 = vector.load %arg7[%c0_10, %c0_11] : memref<16x80xbf16, #tpu.memory_space<vmem>>, vector<16x80xbf16>
    %cst_12 = arith.constant dense<0.000000e+00> : vector<8x80xf32>
    %9 = tpu.matmul %7, %8, %cst_12 {dimension_numbers = #tpu.dot_dimension_numbers<[1], [0], [0], [1], [0, 0, 1, 1], [], []>} : vector<8x16xbf16>, vector<16x80xbf16>, vector<8x80xf32> -> vector<8x80xf32>
    %10 = arith.addf %6, %9 : vector<8x80xf32>
    %c0_13 = arith.constant 0 : index
    %c0_14 = arith.constant 0 : index
    %11 = vector.load %arg4[%c0_13, %c0_14] : memref<8x40xbf16, #tpu.memory_space<vmem>>, vector<8x40xbf16>
    %c0_15 = arith.constant 0 : index
    %c0_16 = arith.constant 0 : index
    %12 = vector.load %arg8[%c0_15, %c0_16] : memref<40x80xbf16, #tpu.memory_space<vmem>>, vector<40x80xbf16>
    %cst_17 = arith.constant dense<0.000000e+00> : vector<8x80xf32>
    %13 = tpu.matmul %11, %12, %cst_17 {dimension_numbers = #tpu.dot_dimension_numbers<[1], [0], [0], [1], [0, 0, 1, 1], [], []>} : vector<8x40xbf16>, vector<40x80xbf16>, vector<8x80xf32> -> vector<8x80xf32>
    %14 = arith.addf %10, %13 : vector<8x80xf32>
    %cst_18 = arith.constant 0.000000e+00 : f32
    %15 = vector.broadcast %cst_18 : f32 to vector<8x80xf32>
    %16 = arith.maximumf %14, %15 : vector<8x80xf32>
    %c0_19 = arith.constant 0 : index
    %c0_20 = arith.constant 0 : index
    %17 = vector.load %arg9[%c0_19, %c0_20] : memref<1x80xf32, #tpu.memory_space<vmem>>, vector<1x80xf32>
    %18 = vector.broadcast %17 : vector<1x80xf32> to vector<8x80xf32>
    %19 = arith.mulf %16, %18 : vector<8x80xf32>
    %cst_21 = arith.constant dense<0.000000e+00> : vector<8xf32>
    %20 = vector.multi_reduction <add>, %19, %cst_21 [1] : vector<8x80xf32> to vector<8xf32>
    %21 = vector.shape_cast %20 : vector<8xf32> to vector<8x1xf32>
    %c0_22 = arith.constant 0 : index
    %c0_23 = arith.constant 0 : index
    %22 = memref.load %arg10[%c0_22, %c0_23] : memref<1x1xf32, #tpu.memory_space<smem>>
    %23 = vector.broadcast %22 : f32 to vector<8x1xf32>
    %24 = arith.addf %21, %23 : vector<8x1xf32>
    %c0_24 = arith.constant 0 : index
    %c0_25 = arith.constant 0 : index
    %25 = vector.load %arg11[%c0_24, %c0_25] : memref<8x1xf32, #tpu.memory_space<vmem>>, vector<8x1xf32>
    tpu.vector_store %arg11[%c0_24, %c0_25], %24 {strides = array<i32>} : memref<8x1xf32, #tpu.memory_space<vmem>>, vector<8x1xf32>,
    return
  }
  func.func @transform_0(%arg0: i32) -> (i32, i32) {
    %c0_i32 = arith.constant 0 : i32
    %c0_i32_0 = arith.constant 0 : i32
    return %arg0, %c0_i32 : i32, i32
  }
  func.func @transform_1(%arg0: i32) -> (i32, i32) {
    %c0_i32 = arith.constant 0 : i32
    %c0_i32_0 = arith.constant 0 : i32
    return %arg0, %c0_i32 : i32, i32
  }
  func.func @transform_2(%arg0: i32) -> (i32, i32) {
    %c0_i32 = arith.constant 0 : i32
    %c0_i32_0 = arith.constant 0 : i32
    return %arg0, %c0_i32 : i32, i32
  }
  func.func @transform_3(%arg0: i32) -> (i32, i32) {
    %c0_i32 = arith.constant 0 : i32
    %c0_i32_0 = arith.constant 0 : i32
    return %arg0, %c0_i32 : i32, i32
  }
  func.func @transform_4(%arg0: i32) -> (i32, i32) {
    %c0_i32 = arith.constant 0 : i32
    %c0_i32_0 = arith.constant 0 : i32
    %c0_i32_1 = arith.constant 0 : i32
    return %c0_i32, %c0_i32_0 : i32, i32
  }
  func.func @transform_5(%arg0: i32) -> (i32, i32) {
    %c0_i32 = arith.constant 0 : i32
    %c0_i32_0 = arith.constant 0 : i32
    %c0_i32_1 = arith.constant 0 : i32
    return %c0_i32, %c0_i32_0 : i32, i32
  }
  func.func @transform_6(%arg0: i32) -> (i32, i32) {
    %c0_i32 = arith.constant 0 : i32
    %c0_i32_0 = arith.constant 0 : i32
    %c0_i32_1 = arith.constant 0 : i32
    return %c0_i32, %c0_i32_0 : i32, i32
  }
  func.func @transform_7(%arg0: i32) -> (i32, i32) {
    %c0_i32 = arith.constant 0 : i32
    %c0_i32_0 = arith.constant 0 : i32
    %c0_i32_1 = arith.constant 0 : i32
    return %c0_i32, %c0_i32_0 : i32, i32
  }
  func.func @transform_8(%arg0: i32) -> (i32, i32) {
    %c0_i32 = arith.constant 0 : i32
    %c0_i32_0 = arith.constant 0 : i32
    %c0_i32_1 = arith.constant 0 : i32
    return %c0_i32, %c0_i32_0 : i32, i32
  }
  func.func @transform_9(%arg0: i32) -> (i32, i32) {
    %c0_i32 = arith.constant 0 : i32
    %c0_i32_0 = arith.constant 0 : i32
    %c0_i32_1 = arith.constant 0 : i32
    return %c0_i32, %c0_i32_0 : i32, i32
  }
  func.func @transform_10(%arg0: i32) -> (i32, i32) {
    %c0_i32 = arith.constant 0 : i32
    %c0_i32_0 = arith.constant 0 : i32
    return %arg0, %c0_i32 : i32, i32
  }
}

</mosaic_0001>

<llo_original>
// kernel: tpu_custom_call.1
$region0: #{tpu_custom_call.1}
  #allocation0 [shape = 'u32[]', space=smem, size = 0x4, offset = 0x4, fixed_abs, tag = 'smem constant byte address 0x4 - core index']
  #allocation1 [shape = 'u32[72,128]{1,0:T(1,128)}', space=vmem, size = 0x9000, scoped, tag = 'internal scratch']
  #allocation2 [shape = 'f32[1,1]{1,0:T(1,128)S(6)}', space=smem, size = 0x200, scoped, tag = 'scoped memory for tpu_custom_call.1']
  %s0 = inlined_call_operand.hbm [shape: bf16[8,64], index: 0, kind: input, shape index: {}]
  %s1 = inlined_call_operand.hbm [shape: bf16[8,40], index: 1, kind: input, shape index: {}]
  %s2 = inlined_call_operand.hbm [shape: bf16[8,16], index: 2, kind: input, shape index: {}]
  %s3 = inlined_call_operand.vmem [shape: bf16[8,40], index: 3, kind: input, shape index: {}]
  %s4 = inlined_call_operand.hbm [shape: bf16[64,80], index: 4, kind: input, shape index: {}]
  %s5 = inlined_call_operand.hbm [shape: bf16[40,80], index: 5, kind: input, shape index: {}]
  %s6 = inlined_call_operand.hbm [shape: bf16[16,80], index: 6, kind: input, shape index: {}]
  %s7 = inlined_call_operand.hbm [shape: bf16[40,80], index: 7, kind: input, shape index: {}]
  %s8 = inlined_call_operand.vmem [shape: f32[1,80], index: 8, kind: input, shape index: {}]
  %s9 = inlined_call_operand.<no memory space> [shape: f32[1,1], index: 9, kind: input, shape index: {}]
  %s10 = inlined_call_operand.vmem [shape: f32[8,1], index: 10, kind: output, shape index: {}]
  %s11 = sld [smem:[#allocation0]]
  $region78: #{tpu_custom_call.1} parent=0
    _
  %s13 = ssub.s32 1, %s11
  %s14 = scalar_select 0, %s13, %s11
  %15 = sst [smem:[#allocation2]] %s9
  $region1: #{tpu_custom_call.1} parent=0
    #allocation3 [shape = 'u8[2048]{0}', space=vmem, size = 0x800, scoped, tag = 'input window, operand 0, single buffered']
    #allocation4 [shape = 's32[1]{0}', space=sflag, size = 0x4, scoped, tag = 'scoped memory for tpu_custom_call.1']
    #allocation5 [shape = 'u8[2048]{0}', space=vmem, size = 0x800, scoped, tag = 'input window, operand 1, single buffered']
    #allocation6 [shape = 's32[1]{0}', space=sflag, size = 0x4, scoped, tag = 'scoped memory for tpu_custom_call.1']
    #allocation7 [shape = 'u8[2048]{0}', space=vmem, size = 0x800, scoped, tag = 'input window, operand 2, single buffered']
    #allocation8 [shape = 'u8[16384]{0}', space=vmem, size = 0x4000, scoped, tag = 'input window, operand 4, single buffered']
    #allocation9 [shape = 's32[1]{0}', space=sflag, size = 0x4, scoped, tag = 'scoped memory for tpu_custom_call.1']
    #allocation10 [shape = 'u8[10240]{0}', space=vmem, size = 0x2800, scoped, tag = 'input window, operand 5, single buffered']
    #allocation11 [shape = 'u8[4096]{0}', space=vmem, size = 0x1000, scoped, tag = 'input window, operand 6, single buffered']
    #allocation12 [shape = 's32[1]{0}', space=sflag, size = 0x4, scoped, tag = 'scoped memory for tpu_custom_call.1']
    #allocation13 [shape = 'u8[10240]{0}', space=vmem, size = 0x2800, scoped, tag = 'input window, operand 7, single buffered']
    %16 = vsyncpa [#allocation4], 0
    %17 = vsyncpa [#allocation6], 0
    %18 = vsyncpa [#allocation9], 0
    %19 = vsyncpa [#allocation12], 0
    // Predicated region
    $region2: #{tpu_custom_call.1} parent=1 // pred_check
      _
    $region3: #{tpu_custom_call.1} parent=1 // pred_check_branch
      %21 = sbr.rel (0) target = $region5
    $region4: #{tpu_custom_call.1} parent=1 // pred_region
      %23 = vsyncadd [#allocation4], 0
      %s25 = sshll.u32 %s0, 4
      %s26 = int_to_ptr.hbm [resolvable:$true] %s25
      %s27 = sshll.u32 [#allocation3], 4
      %s28 = int_to_ptr.vmem [resolvable:$true] %s27
      %30 = dma.hbm_to_vmem [thread:$0]  %s26, 64, %s28, [#allocation4]
    $region5: #{tpu_custom_call.1} parent=1 // pred_fallthru
      _
    // Predicated region
    $region6: #{tpu_custom_call.1} parent=1 // pred_check
      _
    $region7: #{tpu_custom_call.1} parent=1 // pred_check_branch
      %32 = sbr.rel (0) target = $region9
    $region8: #{tpu_custom_call.1} parent=1 // pred_region
      %34 = vsyncadd [#allocation6], 0
      %s36 = sshll.u32 %s1, 4
      %s37 = int_to_ptr.hbm [resolvable:$true] %s36
      %s38 = sshll.u32 [#allocation5], 4
      %s39 = int_to_ptr.vmem [resolvable:$true] %s38
      %41 = dma.hbm_to_vmem [thread:$0]  %s37, 64, %s39, [#allocation6]
    $region9: #{tpu_custom_call.1} parent=1 // pred_fallthru
      _
    // Predicated region
    $region10: #{tpu_custom_call.1} parent=1 // pred_check
      _
    $region11: #{tpu_custom_call.1} parent=1 // pred_check_branch
      %43 = sbr.rel (0) target = $region13
    $region12: #{tpu_custom_call.1} parent=1 // pred_region
      %45 = vsyncadd [#allocation6], 0
      %s47 = sshll.u32 %s2, 4
      %s48 = int_to_ptr.hbm [resolvable:$true] %s47
      %s49 = sshll.u32 [#allocation7], 4
      %s50 = int_to_ptr.vmem [resolvable:$true] %s49
      %52 = dma.hbm_to_vmem [thread:$0]  %s48, 64, %s50, [#allocation6]
    $region13: #{tpu_custom_call.1} parent=1 // pred_fallthru
      _
    // Predicated region
    $region14: #{tpu_custom_call.1} parent=1 // pred_check
      _
    $region15: #{tpu_custom_call.1} parent=1 // pred_check_branch
      %54 = sbr.rel (0) target = $region17
    $region16: #{tpu_custom_call.1} parent=1 // pred_region
      _
    $region17: #{tpu_custom_call.1} parent=1 // pred_fallthru
      _
    // Predicated region
    $region18: #{tpu_custom_call.1} parent=1 // pred_check
      _
    $region19: #{tpu_custom_call.1} parent=1 // pred_check_branch
      %56 = sbr.rel (0) target = $region21
    $region20: #{tpu_custom_call.1} parent=1 // pred_region
      %58 = vsyncadd [#allocation9], 0
      %s59 = sshll.u32 %s4, 4
      %s60 = int_to_ptr.hbm [resolvable:$true] %s59
      %s61 = sshll.u32 [#allocation8], 4
      %s62 = int_to_ptr.vmem [resolvable:$true] %s61
      %67 = dma.hbm_to_vmem [thread:$0]  %s60, 512, %s62, [#allocation9], 64, 64, 4
    $region21: #{tpu_custom_call.1} parent=1 // pred_fallthru
      _
    // Predicated region
    $region22: #{tpu_custom_call.1} parent=1 // pred_check
      _
    $region23: #{tpu_custom_call.1} parent=1 // pred_check_branch
      %69 = sbr.rel (0) target = $region25
    $region24: #{tpu_custom_call.1} parent=1 // pred_region
      %71 = vsyncadd [#allocation9], 0
      %s72 = sshll.u32 %s5, 4
      %s73 = int_to_ptr.hbm [resolvable:$true] %s72
      %s74 = sshll.u32 [#allocation10], 4
      %s75 = int_to_ptr.vmem [resolvable:$true] %s74
      %80 = dma.hbm_to_vmem [thread:$0]  %s73, 320, %s75, [#allocation9], 64, 64, 4
    $region25: #{tpu_custom_call.1} parent=1 // pred_fallthru
      _
    // Predicated region
    $region26: #{tpu_custom_call.1} parent=1 // pred_check
      _
    $region27: #{tpu_custom_call.1} parent=1 // pred_check_branch
      %82 = sbr.rel (0) target = $region29
    $region28: #{tpu_custom_call.1} parent=1 // pred_region
      %84 = vsyncadd [#allocation12], 0
      %s85 = sshll.u32 %s6, 4
      %s86 = int_to_ptr.hbm [resolvable:$true] %s85
      %s87 = sshll.u32 [#allocation11], 4
      %s88 = int_to_ptr.vmem [resolvable:$true] %s87
      %93 = dma.hbm_to_vmem [thread:$0]  %s86, 128, %s88, [#allocation12], 64, 64, 4
    $region29: #{tpu_custom_call.1} parent=1 // pred_fallthru
      _
    // Predicated region
    $region30: #{tpu_custom_call.1} parent=1 // pred_check
      _
    $region31: #{tpu_custom_call.1} parent=1 // pred_check_branch
      %95 = sbr.rel (0) target = $region33
    $region32: #{tpu_custom_call.1} parent=1 // pred_region
      %97 = vsyncadd [#allocation12], 0
      %s98 = sshll.u32 %s7, 4
      %s99 = int_to_ptr.hbm [resolvable:$true] %s98
      %s100 = sshll.u32 [#allocation13], 4
      %s101 = int_to_ptr.vmem [resolvable:$true] %s100
      %106 = dma.hbm_to_vmem [thread:$0]  %s99, 320, %s101, [#allocation12], 64, 64, 4
    $region33: #{tpu_custom_call.1} parent=1 // pred_fallthru
      _
    // Predicated region
    $region34: #{tpu_custom_call.1} parent=1 // pred_check
      _
    $region35: #{tpu_custom_call.1} parent=1 // pred_check_branch
      %108 = sbr.rel (0) target = $region37
    $region36: #{tpu_custom_call.1} parent=1 // pred_region
      _
    $region37: #{tpu_custom_call.1} parent=1 // pred_fallthru
      _
    // Predicated region
    $region38: #{tpu_custom_call.1} parent=1 // pred_check
      _
    $region39: #{tpu_custom_call.1} parent=1 // pred_check_branch
      %110 = sbr.rel (0) target = $region41
    $region40: #{tpu_custom_call.1} parent=1 // pred_region
      _
    $region41: #{tpu_custom_call.1} parent=1 // pred_fallthru
      _
    // Predicated region
    $region42: #{tpu_custom_call.1} parent=1 // pred_check
      _
    $region43: #{tpu_custom_call.1} parent=1 // pred_check_branch
      %112 = sbr.rel (0) target = $region45
    $region44: #{tpu_custom_call.1} parent=1 // pred_region
      %114 = dma.done [#allocation4], 64
    $region45: #{tpu_custom_call.1} parent=1 // pred_fallthru
      _
    // Predicated region
    $region46: #{tpu_custom_call.1} parent=1 // pred_check
      _
    $region47: #{tpu_custom_call.1} parent=1 // pred_check_branch
      %116 = sbr.rel (0) target = $region49
    $region48: #{tpu_custom_call.1} parent=1 // pred_region
      %118 = dma.done [#allocation6], 64
    $region49: #{tpu_custom_call.1} parent=1 // pred_fallthru
      _
    // Predicated region
    $region50: #{tpu_custom_call.1} parent=1 // pred_check
      _
    $region51: #{tpu_custom_call.1} parent=1 // pred_check_branch
      %120 = sbr.rel (0) target = $region53
    $region52: #{tpu_custom_call.1} parent=1 // pred_region
      %122 = dma.done [#allocation6], 64
    $region53: #{tpu_custom_call.1} parent=1 // pred_fallthru
      _
    // Predicated region
    $region54: #{tpu_custom_call.1} parent=1 // pred_check
      _
    $region55: #{tpu_custom_call.1} parent=1 // pred_check_branch
      %124 = sbr.rel (0) target = $region57
    $region56: #{tpu_custom_call.1} parent=1 // pred_region
      %126 = dma.done [#allocation9], 512
    $region57: #{tpu_custom_call.1} parent=1 // pred_fallthru
      _
    // Predicated region
    $region58: #{tpu_custom_call.1} parent=1 // pred_check
      _
    $region59: #{tpu_custom_call.1} parent=1 // pred_check_branch
      %128 = sbr.rel (0) target = $region61
    $region60: #{tpu_custom_call.1} parent=1 // pred_region
      %130 = dma.done [#allocation9], 320
    $region61: #{tpu_custom_call.1} parent=1 // pred_fallthru
      _
    // Predicated region
    $region62: #{tpu_custom_call.1} parent=1 // pred_check
      _
    $region63: #{tpu_custom_call.1} parent=1 // pred_check_branch
      %132 = sbr.rel (0) target = $region65
    $region64: #{tpu_custom_call.1} parent=1 // pred_region
      %134 = dma.done [#allocation12], 128
    $region65: #{tpu_custom_call.1} parent=1 // pred_fallthru
      _
    // Predicated region
    $region66: #{tpu_custom_call.1} parent=1 // pred_check
      _
    $region67: #{tpu_custom_call.1} parent=1 // pred_check_branch
      %136 = sbr.rel (0) target = $region69
    $region68: #{tpu_custom_call.1} parent=1 // pred_region
      %138 = dma.done [#allocation12], 320
    $region69: #{tpu_custom_call.1} parent=1 // pred_fallthru
      _
    %v140 = vld [vmem:[#allocation3] sm:$0xf]
    %v141 = vld [vmem:[#allocation8] sm:$0xf]
    %v142 = vld [vmem:[#allocation8 + $0x4] sm:$0xf]
    %v143 = vld [vmem:[#allocation8 + $0x8] sm:$0xf]
    %v144 = vld [vmem:[#allocation8 + $0xc] sm:$0xf]
    %v145 = vld [vmem:[#allocation8 + $0x10] sm:$0xf]
    %v146 = vld [vmem:[#allocation8 + $0x14] sm:$0xf]
    %v147 = vld [vmem:[#allocation8 + $0x18] sm:$0xf]
    %v148 = vld [vmem:[#allocation8 + $0x1c] sm:$0xf]
    %v149 = vld [vmem:[#allocation5] sm:$0xf]
    %v150 = vld [vmem:[#allocation10] sm:$0xf]
    %v151 = vld [vmem:[#allocation10 + $0x4] sm:$0xf]
    %v152 = vld [vmem:[#allocation10 + $0x8] sm:$0xf]
    %v153 = vld [vmem:[#allocation10 + $0xc] sm:$0xf]
    %v154 = vld [vmem:[#allocation10 + $0x10] sm:$0xf]
    %v160 = vunpack.c.l.b16 %v150
    %v161 = vunpack.c.l.b16 %v151
    %v162 = vunpack.c.l.b16 %v152
    %v163 = vunpack.c.l.b16 %v153
    %v164 = vunpack.c.l.b16 %v154
    %v165 = vpack.c.b16 %v161, %v160
    %v166 = vpack.c.b16 %v163, %v162
    %v167 = vpack.c.b16 %v164, %v164
    %vm170 = vcmask 326656
    %v172 = vsel %vm170, %v149, 0
    %vm174 = vcmask 1043456
    %v176 = vsel %vm174, %v167, 0
    %178 = vmatpush.bf16.msra.mxu0 0
    %179 = vmatpush.bf16.msra.mxu0 0
    %180 = vmatpush.bf16.msra.mxu0 0
    %181 = vmatpush.bf16.msra.mxu0 0
    %182 = vmatpush.bf16.msra.mxu0 0
    %183 = vmatpush.bf16.msra.mxu0 %v176
    %184 = vmatpush.bf16.msra.mxu0 %v166
    %185 = vmatpush.bf16.msra.mxu0 %v165
    %186 = vmatmul.bf16.gmra.mxu0 %v172
    %v187 = vpop.f32.mrf.mxu0
    %v188 = vadd.f32 0.0, %v187
    %v189 = vpop.f32.mrf.mxu0
    %190 = vdwg.mxu0
    %v199 = vunpack.c.l.b16 %v141
    %v200 = vunpack.c.l.b16 %v142
    %v201 = vunpack.c.l.b16 %v143
    %v202 = vunpack.c.l.b16 %v144
    %v203 = vunpack.c.l.b16 %v145
    %v204 = vunpack.c.l.b16 %v146
    %v205 = vunpack.c.l.b16 %v147
    %v206 = vunpack.c.l.b16 %v148
    %v207 = vpack.c.b16 %v200, %v199
    %v208 = vpack.c.b16 %v202, %v201
    %v209 = vpack.c.b16 %v204, %v203
    %v210 = vpack.c.b16 %v206, %v205
    %vm215 = vcmask 523264
    %v217 = vsel %vm215, %v140, 0
    %219 = vmatpush.bf16.msra.mxu0 0
    %220 = vmatpush.bf16.msra.mxu0 0
    %221 = vmatpush.bf16.msra.mxu0 0
    %222 = vmatpush.bf16.msra.mxu0 0
    %223 = vmatpush.bf16.msra.mxu0 %v210
    %224 = vmatpush.bf16.msra.mxu0 %v209
    %225 = vmatpush.bf16.msra.mxu0 %v208
    %226 = vmatpush.bf16.msra.mxu0 %v207
    %227 = vmatmul.bf16.gmra.mxu0 %v217
    %v228 = vpop.f32.mrf.mxu0
    %v229 = vadd.f32 %v188, %v228
    %v230 = vpop.f32.mrf.mxu0
    %231 = vdwg.mxu0
    %v232 = vld [vmem:[#allocation7] sm:$0xf]
    %v233 = vld [vmem:[#allocation11] sm:$0xf]
    %v234 = vld [vmem:[#allocation11 + $0x4] sm:$0xf]
    %v237 = vunpack.c.l.b16 %v233
    %v238 = vunpack.c.l.b16 %v234
    %v239 = vpack.c.b16 %v238, %v237
    %vm241 = vcmask 130048
    %v243 = vsel %vm241, %v232, 0
    %245 = vmatpush.bf16.msra.mxu0 0
    %246 = vmatpush.bf16.msra.mxu0 0
    %247 = vmatpush.bf16.msra.mxu0 0
    %248 = vmatpush.bf16.msra.mxu0 0
    %249 = vmatpush.bf16.msra.mxu0 0
    %250 = vmatpush.bf16.msra.mxu0 0
    %251 = vmatpush.bf16.msra.mxu0 0
    %252 = vmatpush.bf16.msra.mxu0 %v239
    %253 = vmatmul.bf16.gmra.mxu0 %v243
    %v254 = vpop.f32.mrf.mxu0
    %v255 = vadd.f32 0.0, %v254
    %v256 = vpop.f32.mrf.mxu0
    %257 = vdwg.mxu0
    %v258 = vadd.f32 %v229, %v255
    %v259 = vld [vmem:[%s3] sm:$0xf]
    %v260 = vld [vmem:[#allocation13] sm:$0xf]
    %v261 = vld [vmem:[#allocation13 + $0x4] sm:$0xf]
    %v262 = vld [vmem:[#allocation13 + $0x8] sm:$0xf]
    %v263 = vld [vmem:[#allocation13 + $0xc] sm:$0xf]
    %v264 = vld [vmem:[#allocation13 + $0x10] sm:$0xf]
    %v270 = vunpack.c.l.b16 %v260
    %v271 = vunpack.c.l.b16 %v261
    %v272 = vunpack.c.l.b16 %v262
    %v273 = vunpack.c.l.b16 %v263
    %v274 = vunpack.c.l.b16 %v264
    %v275 = vpack.c.b16 %v271, %v270
    %v276 = vpack.c.b16 %v273, %v272
    %v277 = vpack.c.b16 %v274, %v274
    %v281 = vsel %vm170, %v259, 0
    %v284 = vsel %vm174, %v277, 0
    %286 = vmatpush.bf16.msra.mxu0 0
    %287 = vmatpush.bf16.msra.mxu0 0
    %288 = vmatpush.bf16.msra.mxu0 0
    %289 = vmatpush.bf16.msra.mxu0 0
    %290 = vmatpush.bf16.msra.mxu0 0
    %291 = vmatpush.bf16.msra.mxu0 %v284
    %292 = vmatpush.bf16.msra.mxu0 %v276
    %293 = vmatpush.bf16.msra.mxu0 %v275
    %294 = vmatmul.bf16.gmra.mxu0 %v281
    %v295 = vpop.f32.mrf.mxu0
    %v296 = vadd.f32 0.0, %v295
    %v297 = vpop.f32.mrf.mxu0
    %298 = vdwg.mxu0
    %v299 = vadd.f32 %v258, %v296
    %v300 = vmax.f32 %v299, 0.0
    %v301 = vld [vmem:[%s8] sm:$0x1]
    %v303 = vperm.slane %v301, 0
    %v305 = vmul.f32 %v300, %v303
    %vm306 = vcmask 654336
    %v307 = vsel %vm306, %v305, 0.0
    %308 = vadd.xlane.f32.xlu0 %v307
    %v309 = vpop.xlane.xlu0 %308
    %s310 = sld [smem:[#allocation2]]
    %v311 = vstv %s310
    %v312 = vadd.f32 %v309, %v311
    %vm313 = vcmask 7168
    %314 = vst.msk [vmem:[%s10] sm:$0xff] %vm313, %v312
    // Predicated region
    $region70: #{tpu_custom_call.1} parent=1 // pred_check
      _
    $region71: #{tpu_custom_call.1} parent=1 // pred_check_branch
      %316 = sbr.rel (0) target = $region73
    $region72: #{tpu_custom_call.1} parent=1 // pred_region
      _
    $region73: #{tpu_custom_call.1} parent=1 // pred_fallthru
      _
    // Predicated region
    $region74: #{tpu_custom_call.1} parent=1 // pred_check
      _
    $region75: #{tpu_custom_call.1} parent=1 // pred_check_branch
      %318 = sbr.rel (0) target = $region77
    $region76: #{tpu_custom_call.1} parent=1 // pred_region
      _
    $region77: #{tpu_custom_call.1} parent=1 // pred_fallthru
      _
    %319 = vsyncpa [#allocation4], 1
    %320 = vsyncpa [#allocation6], 1
    %321 = vsyncpa [#allocation9], 1
    %322 = vsyncpa [#allocation12], 1

</llo_original>
